<compile_context>
chip_gen: v5e
topology: v5e:2x2
jax: 0.10.0
libtpu: 0.0.40
codegen_flags: <defaults>
</compile_context>

<pallas_src>
from functools import partial

import jax
import jax.numpy as jnp
from jax import lax
from jax.experimental import pallas as pl
from jax.experimental.pallas import tpu as pltpu


def _fused_kernel(x_ref, w_ref, b_ref, o_ref):
    """One grid step = one batch element.

    x_ref : (1, n_components, c, L_in)  all component blocks for this batch
    w_ref : (L_in, P)                   shared linear head (time -> horizon)
    b_ref : (1, P)                      shared bias
    o_ref : (1, c, P)                   component-summed forecast
    """
    n_components = x_ref.shape[1]

    # Component reduction first (cheap VPU adds); the shared linear model
    # commutes with the sum, so one matmul replaces n_components of them.
    x_sum = jnp.sum(x_ref[...], axis=(0, 1))                   # (c, L_in)

    fc = jnp.dot(x_sum, w_ref[...],
                 preferred_element_type=jnp.float32,
                 precision=lax.Precision.HIGHEST)              # (c, P), MXU

    # Reference adds bias once per component then sums -> scale by n_comp.
    o_ref[...] = (fc + jnp.float32(n_components) * b_ref[...])[None, :, :]


@partial(jax.jit, static_argnames=("n_components",))
def input_decomposition_no_decomp(x, x_mark_enc, x_dec, x_mark_dec,
                                  w, b, n_components):
    """x: (B, cC, L_in) float32.  Returns (B, c, P) float32.

    x_mark_enc / x_dec / x_mark_dec are accepted for signature parity with
    the PyTorch wrapper; the synthetic inner linear model does not use them.
    """
    del x_mark_enc, x_dec, x_mark_dec
    B, cC, L_in = x.shape
    c = cC // n_components
    L, P = w.shape
    assert L == L_in

    # Pure reshapes only (no copies, no transposes).
    x4 = x.reshape(B, n_components, c, L_in)
    b2 = b.reshape(1, P)

    out = pl.pallas_call(
        _fused_kernel,
        out_shape=jax.ShapeDtypeStruct((B, c, P), jnp.float32),
        grid=(B,),
        in_specs=[
            pl.BlockSpec((1, n_components, c, L_in), lambda i: (i, 0, 0, 0)),
            pl.BlockSpec((L_in, P), lambda i: (0, 0)),
            pl.BlockSpec((1, P), lambda i: (0, 0)),
        ],
        out_specs=pl.BlockSpec((1, c, P), lambda i: (i, 0, 0)),
        compiler_params=pltpu.CompilerParams(
            dimension_semantics=("parallel",)),
    )(x4, w, b2)

    return out


def _reference(x, w, b, n_components):
    B, cC, L_in = x.shape
    c = cC // n_components
    forecast = jnp.einsum('bcl,lp->bcp', x, w,
                          precision=lax.Precision.HIGHEST) + b[None, None, :]
    unmerged = forecast.reshape(B, n_components, c, -1)
    out = jnp.transpose(unmerged, (1, 0, 2, 3))
    return jnp.sum(out, axis=0)


if __name__ == "__main__":
    # Small shapes consistent with the module's forward.
    B = 2
    n_components = 4
    c = 4
    cC = n_components * c          # merged channel dim
    L_in = 16                      # encoder sequence length
    P = 8                          # prediction horizon
    mark_dim = 3

    key = jax.random.PRNGKey(0)
    kx, kme, kxd, kmd, kw, kb = jax.random.split(key, 6)

    x = jax.random.normal(kx, (B, cC, L_in), dtype=jnp.float32)
    x_mark_enc = jax.random.normal(kme, (B, L_in, mark_dim), dtype=jnp.float32)
    x_dec = jax.random.normal(kxd, (B, cC, P), dtype=jnp.float32)
    x_mark_dec = jax.random.normal(kmd, (B, P, mark_dim), dtype=jnp.float32)

    # Deterministic synthetic inner-model parameters (linear time -> horizon),
    # shared across channels/components (required for the sum-before-matmul
    # linearity trick).
    w = jax.random.normal(kw, (L_in, P), dtype=jnp.float32) * 0.1
    b = jax.random.normal(kb, (P,), dtype=jnp.float32) * 0.01

    out = input_decomposition_no_decomp(
        x, x_mark_enc, x_dec, x_mark_dec, w, b, n_components)
    out = jax.block_until_ready(out)

    ref = _reference(x, w, b, n_components)
    assert out.shape == (B, c, P)
    assert jnp.allclose(out, ref, atol=1e-4, rtol=1e-4)

    # TODO(synk): interpretable_outputs branch only stashes a detached CPU copy
    # of the per-component tensor; no device compute, so it is not kernelized.
    print("KERNEL_OK")
</pallas_src>

<mosaic_0001>
module attributes {stable_mosaic.version = 11 : i64} {
  func.func @_fused_kernel(%arg0: i32, %arg1: memref<1x4x4x16xf32, #tpu.memory_space<vmem>>, %arg2: memref<16x8xf32, #tpu.memory_space<vmem>>, %arg3: memref<1x8xf32, #tpu.memory_space<vmem>>, %arg4: memref<1x4x8xf32, #tpu.memory_space<vmem>>) attributes {dimension_semantics = [#tpu.dimension_semantics<parallel>], iteration_bounds = array<i64: 2>, scalar_prefetch = 0 : i64, scratch_operands = 0 : i64, tpu.core_type = #tpu.core_type<tc>, window_params = [{transform_indices = @transform_0, window_bounds = array<i64: 1, 4, 4, 16>}, {pipeline_mode = #tpu.pipeline_mode<synchronous>, transform_indices = @transform_1, window_bounds = array<i64: 16, 8>}, {pipeline_mode = #tpu.pipeline_mode<synchronous>, transform_indices = @transform_2, window_bounds = array<i64: 1, 8>}, {transform_indices = @transform_3, window_bounds = array<i64: 1, 4, 8>}]} {
    %c0 = arith.constant 0 : index
    %c0_0 = arith.constant 0 : index
    %c0_1 = arith.constant 0 : index
    %c0_2 = arith.constant 0 : index
    %0 = vector.load %arg1[%c0, %c0_0, %c0_1, %c0_2] : memref<1x4x4x16xf32, #tpu.memory_space<vmem>>, vector<1x4x4x16xf32>
    %cst = arith.constant dense<0.000000e+00> : vector<4x16xf32>
    %1 = vector.multi_reduction <add>, %0, %cst [0, 1] : vector<1x4x4x16xf32> to vector<4x16xf32>
    %c0_3 = arith.constant 0 : index
    %c0_4 = arith.constant 0 : index
    %2 = vector.load %arg2[%c0_3, %c0_4] : memref<16x8xf32, #tpu.memory_space<vmem>>, vector<16x8xf32>
    %cst_5 = arith.constant dense<0.000000e+00> : vector<4x8xf32>
    %3 = tpu.matmul %1, %2, %cst_5 {dimension_numbers = #tpu.dot_dimension_numbers<[1], [0], [0], [1], [0, 0, 1, 1], [], []>, precision = #tpu.contract_precision<fp32>} : vector<4x16xf32>, vector<16x8xf32>, vector<4x8xf32> -> vector<4x8xf32>
    %c0_6 = arith.constant 0 : index
    %c0_7 = arith.constant 0 : index
    %4 = vector.load %arg3[%c0_6, %c0_7] : memref<1x8xf32, #tpu.memory_space<vmem>>, vector<1x8xf32>
    %cst_8 = arith.constant 4.000000e+00 : f32
    %5 = vector.broadcast %cst_8 : f32 to vector<1x8xf32>
    %6 = arith.mulf %5, %4 : vector<1x8xf32>
    %7 = vector.broadcast %6 : vector<1x8xf32> to vector<4x8xf32>
    %8 = arith.addf %3, %7 : vector<4x8xf32>
    %9 = vector.shape_cast %8 : vector<4x8xf32> to vector<1x4x8xf32>
    %c0_9 = arith.constant 0 : index
    %c0_10 = arith.constant 0 : index
    %c0_11 = arith.constant 0 : index
    %10 = vector.load %arg4[%c0_9, %c0_10, %c0_11] : memref<1x4x8xf32, #tpu.memory_space<vmem>>, vector<1x4x8xf32>
    tpu.vector_store %arg4[%c0_9, %c0_10, %c0_11], %9 {strides = array<i32>} : memref<1x4x8xf32, #tpu.memory_space<vmem>>, vector<1x4x8xf32>,
    return
  }
  func.func @transform_0(%arg0: i32) -> (i32, i32, i32, i32) {
    %c0_i32 = arith.constant 0 : i32
    %c0_i32_0 = arith.constant 0 : i32
    %c0_i32_1 = arith.constant 0 : i32
    %c0_i32_2 = arith.constant 0 : i32
    return %arg0, %c0_i32, %c0_i32_0, %c0_i32_1 : i32, i32, i32, i32
  }
  func.func @transform_1(%arg0: i32) -> (i32, i32) {
    %c0_i32 = arith.constant 0 : i32
    %c0_i32_0 = arith.constant 0 : i32
    %c0_i32_1 = arith.constant 0 : i32
    return %c0_i32, %c0_i32_0 : i32, i32
  }
  func.func @transform_2(%arg0: i32) -> (i32, i32) {
    %c0_i32 = arith.constant 0 : i32
    %c0_i32_0 = arith.constant 0 : i32
    %c0_i32_1 = arith.constant 0 : i32
    return %c0_i32, %c0_i32_0 : i32, i32
  }
  func.func @transform_3(%arg0: i32) -> (i32, i32, i32) {
    %c0_i32 = arith.constant 0 : i32
    %c0_i32_0 = arith.constant 0 : i32
    %c0_i32_1 = arith.constant 0 : i32
    return %arg0, %c0_i32, %c0_i32_0 : i32, i32, i32
  }
}

</mosaic_0001>

<llo_original>
// kernel: input_decomposition_no_decomp.1
$region0: #{input_decomposition_no_decomp.1}
  #allocation0 [shape = 'u32[]', space=smem, size = 0x4, offset = 0x4, fixed_abs, tag = 'smem constant byte address 0x4 - core index']
  #allocation1 [shape = 'u32[72,128]{1,0:T(1,128)}', space=vmem, size = 0x9000, scoped, tag = 'internal scratch']
  %s0 = inlined_call_operand.hbm [shape: f32[2,4,4,16], index: 0, kind: input, shape index: {}]
  %s1 = inlined_call_operand.vmem [shape: f32[16,8], index: 1, kind: input, shape index: {}]
  %s2 = inlined_call_operand.vmem [shape: f32[1,8], index: 2, kind: input, shape index: {}]
  %s3 = inlined_call_operand.hbm [shape: f32[2,4,8], index: 3, kind: output, shape index: {}]
  %s4 = sld [smem:[#allocation0]]
  $region49: #{input_decomposition_no_decomp.1} parent=0
    _
  %s6 = ssub.s32 1, %s4
  %s7 = scalar_select 0, %s6, %s4
  $region1: #{input_decomposition_no_decomp.1} parent=0
    #allocation2 [shape = 'u8[16384]{0}', space=vmem, size = 0x4000, scoped, tag = 'input window, operand 0']
    #allocation3 [shape = 's32[2]{0}', space=sflag, size = 0x8, scoped, tag = 'scoped memory for input_decomposition_no_decomp.1']
    #allocation4 [shape = 's32[2]{0}', space=sflag, size = 0x8, scoped, tag = 'scoped memory for input_decomposition_no_decomp.1']
    #allocation5 [shape = 'u8[4096]{0}', space=vmem, size = 0x1000, scoped, tag = 'output window, operand 0']
    %8 = vsyncpa [#allocation3], 0
    %s9 = scalar_lea.sflag [#allocation3], 1
    %10 = vsyncpa %s9, 0
    %11 = vsyncpa [#allocation4], 0
    %s12 = scalar_lea.sflag [#allocation4], 1
    %13 = vsyncpa %s12, 0
    loop: start=0, step=1, limit=4
    $region2: #{input_decomposition_no_decomp.1} parent=1 // loop_pre_header
      _
    $region3: #{input_decomposition_no_decomp.1} parent=1 // loop_header
      %s15 = sphi 0, %s19
      %p16 = scmp.ge.s32.totalorder %s15, 4
      %s25 = sphi 0, %s27
      %s28 = sphi 0, %s25
      %s29 = sphi 0, %s28
      %s45 = sphi 0, %s29
      %s49 = sphi 0, %s49
      %s51 = sphi 0, %s49
      %s52 = sphi 0, %s51
      %s66 = sphi 0, %s52
      %s70 = sphi 0, %s70
      %s72 = sphi 0, %s70
      %s73 = sphi 0, %s72
      %s87 = sphi 0, %s73
      %s93 = sphi 0, %s95
      %s96 = sphi 0, %s93
      %s97 = sphi 0, %s96
      %s113 = sphi 0, %s97
    $region4: #{input_decomposition_no_decomp.1} parent=1 // loop_header_branch
      %18 = sbr.rel (%p16) target = $region8
    $region5: #{input_decomposition_no_decomp.1} parent=1 // loop_body
      %s20 = ssub.s32 %s15, 1
      %s21 = ssub.s32 %s15, 2
      %s22 = sadd.s32 %s15, 1
      %s23 = ssub.s32 %s15, %s22
      %p24 = scmp.eq.s32.totalorder %s23, 0
      %s26 = sadd.s32 %s25, 1
      %s27 = scalar_select %p24, %s25, %s26
      %p30 = pneg %p24
      %p31 = scmp.eq.s32.totalorder %s15, 1
      %p32 = por %p30, %p31
      %p33 = scmp.ne.s32.totalorder %s25, %s28
      %p34 = scmp.eq.s32.totalorder %s15, 0
      %p35 = por %p33, %p34
      %p36 = scmp.ne.s32.totalorder %s25, %s28
      %p37 = scmp.eq.s32.totalorder %s20, 1
      %p38 = por %p36, %p37
      %p39 = scmp.ne.s32.totalorder %s28, %s29
      %p40 = scmp.eq.s32.totalorder %s20, 0
      %p41 = por %p39, %p40
      %p42 = scmp.ne.s32.totalorder %s28, %s29
      %p43 = scmp.eq.s32.totalorder %s21, 1
      %p44 = por %p42, %p43
      %p46 = scmp.ne.s32.totalorder %s29, %s45
      %p47 = scmp.eq.s32.totalorder %s21, 0
      %p48 = por %p46, %p47
      %s50 = sadd.s32 %s49, 1
      %p53 = scmp.eq.s32.totalorder %s15, 1
      %p54 = scmp.ne.s32.totalorder %s49, %s51
      %p55 = scmp.eq.s32.totalorder %s15, 0
      %p56 = por %p54, %p55
      %p57 = scmp.ne.s32.totalorder %s49, %s51
      %p58 = scmp.eq.s32.totalorder %s20, 1
      %p59 = por %p57, %p58
      %p60 = scmp.ne.s32.totalorder %s51, %s52
      %p61 = scmp.eq.s32.totalorder %s20, 0
      %p62 = por %p60, %p61
      %p63 = scmp.ne.s32.totalorder %s51, %s52
      %p64 = scmp.eq.s32.totalorder %s21, 1
      %p65 = por %p63, %p64
      %p67 = scmp.ne.s32.totalorder %s52, %s66
      %p68 = scmp.eq.s32.totalorder %s21, 0
      %p69 = por %p67, %p68
      %s71 = sadd.s32 %s70, 1
      %p74 = scmp.eq.s32.totalorder %s15, 1
      %p75 = scmp.ne.s32.totalorder %s70, %s72
      %p76 = scmp.eq.s32.totalorder %s15, 0
      %p77 = por %p75, %p76
      %p78 = scmp.ne.s32.totalorder %s70, %s72
      %p79 = scmp.eq.s32.totalorder %s20, 1
      %p80 = por %p78, %p79
      %p81 = scmp.ne.s32.totalorder %s72, %s73
      %p82 = scmp.eq.s32.totalorder %s20, 0
      %p83 = por %p81, %p82
      %p84 = scmp.ne.s32.totalorder %s72, %s73
      %p85 = scmp.eq.s32.totalorder %s21, 1
      %p86 = por %p84, %p85
      %p88 = scmp.ne.s32.totalorder %s73, %s87
      %p89 = scmp.eq.s32.totalorder %s21, 0
      %p90 = por %p88, %p89
      %s91 = ssub.s32 %s15, %s22
      %p92 = scmp.eq.s32.totalorder %s91, 0
      %s94 = sadd.s32 %s93, 1
      %s95 = scalar_select %p92, %s93, %s94
      %p98 = pneg %p92
      %p99 = scmp.eq.s32.totalorder %s15, 1
      %p100 = por %p98, %p99
      %p101 = scmp.ne.s32.totalorder %s93, %s96
      %p102 = scmp.eq.s32.totalorder %s15, 0
      %p103 = por %p101, %p102
      %p104 = scmp.ne.s32.totalorder %s93, %s96
      %p105 = scmp.eq.s32.totalorder %s20, 1
      %p106 = por %p104, %p105
      %p107 = scmp.ne.s32.totalorder %s96, %s97
      %p108 = scmp.eq.s32.totalorder %s20, 0
      %p109 = por %p107, %p108
      %p110 = scmp.ne.s32.totalorder %s96, %s97
      %p111 = scmp.eq.s32.totalorder %s21, 1
      %p112 = por %p110, %p111
      %p114 = scmp.ne.s32.totalorder %s97, %s113
      %p115 = scmp.eq.s32.totalorder %s21, 0
      %p116 = por %p114, %p115
      %p117 = scmp.le.s32.totalorder 1, %s15
      %p118 = scmp.lt.s32.totalorder %s15, 3
      %p119 = pnand %p117, %p118
      %p120 = pneg %p119
      // Predicated region
      $region9: #{input_decomposition_no_decomp.1} parent=5 // pred_check
        _
      $region10: #{input_decomposition_no_decomp.1} parent=5 // pred_check_branch
        %122 = sbr.rel (%p119) target = $region12
      $region11: #{input_decomposition_no_decomp.1} parent=5 // pred_region
        %s123 = ssub.s32 %s15, 1
        // Predicated region
        $region13: #{input_decomposition_no_decomp.1} parent=11 // pred_check
          %p124 = pneg %p62
        $region14: #{input_decomposition_no_decomp.1} parent=11 // pred_check_branch
          %126 = sbr.rel (%p124) target = $region16
        $region15: #{input_decomposition_no_decomp.1} parent=11 // pred_region
          _
        $region16: #{input_decomposition_no_decomp.1} parent=11 // pred_fallthru
          _
        // Predicated region
        $region17: #{input_decomposition_no_decomp.1} parent=11 // pred_check
          %p127 = pneg %p83
        $region18: #{input_decomposition_no_decomp.1} parent=11 // pred_check_branch
          %129 = sbr.rel (%p127) target = $region20
        $region19: #{input_decomposition_no_decomp.1} parent=11 // pred_region
          _
        $region20: #{input_decomposition_no_decomp.1} parent=11 // pred_fallthru
          _
      $region12: #{input_decomposition_no_decomp.1} parent=5 // pred_fallthru
        _
      %p130 = scmp.lt.s32.totalorder %s15, 2
      // Predicated region
      $region21: #{input_decomposition_no_decomp.1} parent=5 // pred_check
        %p131 = pneg %p130
      $region22: #{input_decomposition_no_decomp.1} parent=5 // pred_check_branch
        %133 = sbr.rel (%p131) target = $region24
      $region23: #{input_decomposition_no_decomp.1} parent=5 // pred_region
        // Predicated region
        $region25: #{input_decomposition_no_decomp.1} parent=23 // pred_check
          %p134 = pneg %p35
        $region26: #{input_decomposition_no_decomp.1} parent=23 // pred_check_branch
          %136 = sbr.rel (%p134) target = $region28
        $region27: #{input_decomposition_no_decomp.1} parent=23 // pred_region
          %s137 = sand.u32 %s25, 1
          %s138 = scalar_lea.sflag [#allocation3], %s137
          %s139 = sand.u32 %s25, 1
          %s140 = smul.addr %s139, 16
          %s141 = scalar_lea.vmem [#allocation2], %s140
          %143 = vsyncadd %s138, 0
          %s144 = smul.addr %s15, 4
          %s145 = smul.addr %s144, 4
          %s146 = scalar_lea.hbm %s0, %s145
          %s147 = sshll.u32 %s146, 4
          %s148 = int_to_ptr.hbm [resolvable:$true] %s147
          %s149 = sshll.u32 %s141, 4
          %s150 = int_to_ptr.vmem [resolvable:$true] %s149
          %155 = dma.hbm_to_vmem [thread:$0]  %s148, 256, %s150, %s138, 64, 64, 4
        $region28: #{input_decomposition_no_decomp.1} parent=23 // pred_fallthru
          _
      $region24: #{input_decomposition_no_decomp.1} parent=5 // pred_fallthru
        _
      %p156 = scmp.le.s32.totalorder 1, %s15
      %p157 = scmp.lt.s32.totalorder %s15, 3
      %p158 = pnand %p156, %p157
      %p159 = pneg %p158
      // Predicated region
      $region29: #{input_decomposition_no_decomp.1} parent=5 // pred_check
        _
      $region30: #{input_decomposition_no_decomp.1} parent=5 // pred_check_branch
        %161 = sbr.rel (%p158) target = $region32
      $region31: #{input_decomposition_no_decomp.1} parent=5 // pred_region
        %s162 = ssub.s32 %s15, 1
        %s163 = sand.u32 %s28, 1
        %s164 = scalar_lea.sflag [#allocation3], %s163
        %s165 = sand.u32 %s28, 1
        %s166 = smul.addr %s165, 16
        %s167 = scalar_lea.vmem [#allocation2], %s166
        // Predicated region
        $region33: #{input_decomposition_no_decomp.1} parent=31 // pred_check
          %p168 = pneg %p41
        $region34: #{input_decomposition_no_decomp.1} parent=31 // pred_check_branch
          %170 = sbr.rel (%p168) target = $region36
        $region35: #{input_decomposition_no_decomp.1} parent=31 // pred_region
          %172 = dma.done %s164, 256
        $region36: #{input_decomposition_no_decomp.1} parent=31 // pred_fallthru
          _
        %s173 = sand.u32 %s28, 1
        %s174 = scalar_lea.sflag [#allocation3], %s173
        %s175 = sand.u32 %s28, 1
        %s176 = smul.addr %s175, 16
        %s177 = scalar_lea.vmem [#allocation2], %s176
        %p178 = pneg %p41
        %p179 = pneg %p38
        %p180 = pneg %p62
        %p181 = pneg %p59
        %p182 = pneg %p83
        %p183 = pneg %p80
        %p184 = pneg %p109
        %p185 = pneg %p106
        %s186 = sand.u32 %s96, 1
        %s187 = scalar_lea.sflag [#allocation4], %s186
        %s188 = sand.u32 %s96, 1
        %s189 = smul.addr %s188, 4
        %s190 = scalar_lea.vmem [#allocation5], %s189
        %v191 = vld [vmem:[%s167] sm:$0xf]
        %v192 = vld [vmem:[%s167 + $0x4] sm:$0xf]
        %v193 = vld [vmem:[%s167 + $0x8] sm:$0xf]
        %v194 = vld [vmem:[%s167 + $0xc] sm:$0xf]
        %vm195 = vcmask 125952
        %v196 = vsel %vm195, %v191, 0.0
        %v197 = vsel %vm195, %v192, 0.0
        %v198 = vadd.f32 %v196, %v197
        %v199 = vsel %vm195, %v193, 0.0
        %v200 = vadd.f32 %v198, %v199
        %v201 = vsel %vm195, %v194, 0.0
        %v202 = vadd.f32 %v200, %v201
        %v203 = vld [vmem:[%s1] sm:$0xff]
        %v204 = vld [vmem:[%s1 + $0x8] sm:$0xff]
        %v205 = vld [vmem:[%s2] sm:$0x1]
        %v206 = vmul.f32 %v205, 4.0
        %v208 = vperm.slane %v206, 0
        %vm210 = vcmask 130048
        %v212 = vsel %vm210, %v202, 0
        %214 = vmatpush.msra.mxu0 0.0
        %215 = vmatpush.msra.mxu0 0.0
        %216 = vmatpush.msra.mxu0 0.0
        %217 = vmatpush.msra.mxu0 0.0
        %218 = vmatpush.msra.mxu0 0.0
        %219 = vmatpush.msra.mxu0 0.0
        %220 = vmatpush.msra.mxu0 0.0
        %221 = vmatpush.msra.mxu0 0.0
        %222 = vmatpush.msra.mxu0 0.0
        %223 = vmatpush.msra.mxu0 0.0
        %224 = vmatpush.msra.mxu0 0.0
        %225 = vmatpush.msra.mxu0 0.0
        %226 = vmatpush.msra.mxu0 0.0
        %227 = vmatpush.msra.mxu0 0.0
        %v228 = vand.u32 %v204, 4294901760
        %229 = vmatpush.msra.mxu0 %v228
        %v230 = vand.u32 %v203, 4294901760
        %231 = vmatpush.msra.mxu0 %v230
        %v232 = vand.u32 %v212, 4294901760
        %v233 = vsub.f32 %v212, %v232
        %v234 = vand.u32 %v233, 4294901760
        %v235 = vsub.f32 %v233, %v234
        %v236 = vand.u32 %v235, 4294901760
        %237 = vmatmul.f32.gmra.mxu0 %v236
        %v238 = vpop.f32.mrf.mxu0
        %v239 = vadd.f32 %v208, %v238
        %240 = vdwg.mxu0
        %241 = vmatpush.msra.mxu0 0.0
        %242 = vmatpush.msra.mxu0 0.0
        %243 = vmatpush.msra.mxu0 0.0
        %244 = vmatpush.msra.mxu0 0.0
        %245 = vmatpush.msra.mxu0 0.0
        %246 = vmatpush.msra.mxu0 0.0
        %247 = vmatpush.msra.mxu0 0.0
        %248 = vmatpush.msra.mxu0 0.0
        %249 = vmatpush.msra.mxu0 0.0
        %250 = vmatpush.msra.mxu0 0.0
        %251 = vmatpush.msra.mxu0 0.0
        %252 = vmatpush.msra.mxu0 0.0
        %253 = vmatpush.msra.mxu0 0.0
        %254 = vmatpush.msra.mxu0 0.0
        %v255 = vand.u32 %v204, 4294901760
        %v256 = vsub.f32 %v204, %v255
        %v257 = vand.u32 %v256, 4294901760
        %v258 = vsub.f32 %v256, %v257
        %v259 = vand.u32 %v258, 4294901760
        %260 = vmatpush.msra.mxu0 %v259
        %v261 = vand.u32 %v203, 4294901760
        %v262 = vsub.f32 %v203, %v261
        %v263 = vand.u32 %v262, 4294901760
        %v264 = vsub.f32 %v262, %v263
        %v265 = vand.u32 %v264, 4294901760
        %266 = vmatpush.msra.mxu0 %v265
        %v267 = vand.u32 %v212, 4294901760
        %268 = vmatmul.f32.gmra.mxu0 %v267
        %v269 = vpop.f32.mrf.mxu0
        %v270 = vadd.f32 %v239, %v269
        %271 = vdwg.mxu0
        %272 = vmatpush.msra.mxu0 0.0
        %273 = vmatpush.msra.mxu0 0.0
        %274 = vmatpush.msra.mxu0 0.0
        %275 = vmatpush.msra.mxu0 0.0
        %276 = vmatpush.msra.mxu0 0.0
        %277 = vmatpush.msra.mxu0 0.0
        %278 = vmatpush.msra.mxu0 0.0
        %279 = vmatpush.msra.mxu0 0.0
        %280 = vmatpush.msra.mxu0 0.0
        %281 = vmatpush.msra.mxu0 0.0
        %282 = vmatpush.msra.mxu0 0.0
        %283 = vmatpush.msra.mxu0 0.0
        %284 = vmatpush.msra.mxu0 0.0
        %285 = vmatpush.msra.mxu0 0.0
        %v286 = vand.u32 %v204, 4294901760
        %v287 = vsub.f32 %v204, %v286
        %288 = vmatpush.msra.mxu0 %v287
        %v289 = vand.u32 %v203, 4294901760
        %v290 = vsub.f32 %v203, %v289
        %291 = vmatpush.msra.mxu0 %v290
        %v292 = vand.u32 %v212, 4294901760
        %v293 = vsub.f32 %v212, %v292
        %294 = vmatmul.f32.gmra.mxu0 %v293
        %v295 = vpop.f32.mrf.mxu0
        %v296 = vadd.f32 %v270, %v295
        %297 = vdwg.mxu0
        %298 = vmatpush.msra.mxu0 0.0
        %299 = vmatpush.msra.mxu0 0.0
        %300 = vmatpush.msra.mxu0 0.0
        %301 = vmatpush.msra.mxu0 0.0
        %302 = vmatpush.msra.mxu0 0.0
        %303 = vmatpush.msra.mxu0 0.0
        %304 = vmatpush.msra.mxu0 0.0
        %305 = vmatpush.msra.mxu0 0.0
        %306 = vmatpush.msra.mxu0 0.0
        %307 = vmatpush.msra.mxu0 0.0
        %308 = vmatpush.msra.mxu0 0.0
        %309 = vmatpush.msra.mxu0 0.0
        %310 = vmatpush.msra.mxu0 0.0
        %311 = vmatpush.msra.mxu0 0.0
        %v312 = vand.u32 %v204, 4294901760
        %313 = vmatpush.msra.mxu0 %v312
        %v314 = vand.u32 %v203, 4294901760
        %315 = vmatpush.msra.mxu0 %v314
        %v316 = vand.u32 %v212, 4294901760
        %v317 = vsub.f32 %v212, %v316
        %v318 = vand.u32 %v317, 4294901760
        %319 = vmatmul.f32.gmra.mxu0 %v318
        %v320 = vpop.f32.mrf.mxu0
        %v321 = vadd.f32 %v296, %v320
        %322 = vdwg.mxu0
        %323 = vmatpush.msra.mxu0 0.0
        %324 = vmatpush.msra.mxu0 0.0
        %325 = vmatpush.msra.mxu0 0.0
        %326 = vmatpush.msra.mxu0 0.0
        %327 = vmatpush.msra.mxu0 0.0
        %328 = vmatpush.msra.mxu0 0.0
        %329 = vmatpush.msra.mxu0 0.0
        %330 = vmatpush.msra.mxu0 0.0
        %331 = vmatpush.msra.mxu0 0.0
        %332 = vmatpush.msra.mxu0 0.0
        %333 = vmatpush.msra.mxu0 0.0
        %334 = vmatpush.msra.mxu0 0.0
        %335 = vmatpush.msra.mxu0 0.0
        %336 = vmatpush.msra.mxu0 0.0
        %v337 = vand.u32 %v204, 4294901760
        %v338 = vsub.f32 %v204, %v337
        %v339 = vand.u32 %v338, 4294901760
        %340 = vmatpush.msra.mxu0 %v339
        %v341 = vand.u32 %v203, 4294901760
        %v342 = vsub.f32 %v203, %v341
        %v343 = vand.u32 %v342, 4294901760
        %344 = vmatpush.msra.mxu0 %v343
        %v345 = vand.u32 %v212, 4294901760
        %346 = vmatmul.f32.gmra.mxu0 %v345
        %v347 = vpop.f32.mrf.mxu0
        %v348 = vadd.f32 %v321, %v347
        %349 = vdwg.mxu0
        %350 = vmatpush.msra.mxu0 0.0
        %351 = vmatpush.msra.mxu0 0.0
        %352 = vmatpush.msra.mxu0 0.0
        %353 = vmatpush.msra.mxu0 0.0
        %354 = vmatpush.msra.mxu0 0.0
        %355 = vmatpush.msra.mxu0 0.0
        %356 = vmatpush.msra.mxu0 0.0
        %357 = vmatpush.msra.mxu0 0.0
        %358 = vmatpush.msra.mxu0 0.0
        %359 = vmatpush.msra.mxu0 0.0
        %360 = vmatpush.msra.mxu0 0.0
        %361 = vmatpush.msra.mxu0 0.0
        %362 = vmatpush.msra.mxu0 0.0
        %363 = vmatpush.msra.mxu0 0.0
        %v364 = vand.u32 %v204, 4294901760
        %365 = vmatpush.msra.mxu0 %v364
        %v366 = vand.u32 %v203, 4294901760
        %367 = vmatpush.msra.mxu0 %v366
        %v368 = vand.u32 %v212, 4294901760
        %369 = vmatmul.f32.gmra.mxu0 %v368
        %v370 = vpop.f32.mrf.mxu0
        %v371 = vadd.f32 %v348, %v370
        %372 = vdwg.mxu0
        %vm373 = vcmask 60416
        %374 = vst.msk [vmem:[%s190] sm:$0xf] %vm373, %v371
        %s375 = sand.u32 %s96, 1
        %s376 = scalar_lea.sflag [#allocation4], %s375
        %s377 = sand.u32 %s96, 1
        %s378 = smul.addr %s377, 4
        %s379 = scalar_lea.vmem [#allocation5], %s378
        // Predicated region
        $region37: #{input_decomposition_no_decomp.1} parent=31 // pred_check
          %p380 = pneg %p106
        $region38: #{input_decomposition_no_decomp.1} parent=31 // pred_check_branch
          %382 = sbr.rel (%p380) target = $region40
        $region39: #{input_decomposition_no_decomp.1} parent=31 // pred_region
          %384 = vsyncadd %s376, 0
          %s385 = smul.addr %s20, 4
          %s386 = scalar_lea.hbm %s3, %s385
          %s388 = sshll.u32 %s379, 4
          %s389 = int_to_ptr.vmem [resolvable:$true] %s388
          %s390 = sshll.u32 %s386, 4
          %s391 = int_to_ptr.hbm [resolvable:$true] %s390
          %393 = dma.vmem_to_hbm [thread:$0]  %s389, 64, %s391, %s376
        $region40: #{input_decomposition_no_decomp.1} parent=31 // pred_fallthru
          _
      $region32: #{input_decomposition_no_decomp.1} parent=5 // pred_fallthru
        _
      %p394 = scmp.le.s32.totalorder 2, %s15
      // Predicated region
      $region41: #{input_decomposition_no_decomp.1} parent=5 // pred_check
        %p395 = pneg %p394
      $region42: #{input_decomposition_no_decomp.1} parent=5 // pred_check_branch
        %397 = sbr.rel (%p395) target = $region44
      $region43: #{input_decomposition_no_decomp.1} parent=5 // pred_region
        %s398 = ssub.s32 %s15, 2
        // Predicated region
        $region45: #{input_decomposition_no_decomp.1} parent=43 // pred_check
          %p399 = pneg %p112
        $region46: #{input_decomposition_no_decomp.1} parent=43 // pred_check_branch
          %401 = sbr.rel (%p399) target = $region48
        $region47: #{input_decomposition_no_decomp.1} parent=43 // pred_region
          %s402 = sand.u32 %s97, 1
          %s403 = scalar_lea.sflag [#allocation4], %s402
          %s404 = sand.u32 %s97, 1
          %s405 = smul.addr %s404, 4
          %s406 = scalar_lea.vmem [#allocation5], %s405
          %408 = dma.done %s403, 64
        $region48: #{input_decomposition_no_decomp.1} parent=43 // pred_fallthru
          _
      $region44: #{input_decomposition_no_decomp.1} parent=5 // pred_fallthru
        _
    $region6: #{input_decomposition_no_decomp.1} parent=1 // loop_footer
      %s19 = sadd.s32 1, %s15
    $region7: #{input_decomposition_no_decomp.1} parent=1 // loop_footer_branch
      %14 = sbr.rel target = $region3
    $region8: #{input_decomposition_no_decomp.1} parent=1 // loop_exit
      _
    %409 = vsyncpa [#allocation3], 1
    %s410 = scalar_lea.sflag [#allocation3], 1
    %411 = vsyncpa %s410, 1
    %412 = vsyncpa [#allocation4], 1
    %s413 = scalar_lea.sflag [#allocation4], 1
    %414 = vsyncpa %s413, 1

</llo_original>
